<compile_context>
chip_gen: v7x
topology: tpu7x:2x2x1
jax: 0.10.0
libtpu: 0.0.40
codegen_flags: <defaults>
</compile_context>

<pallas_src>
import functools

import jax
import jax.numpy as jnp
from jax.experimental import pallas as pl
from jax.experimental.pallas import tpu as pltpu

FEAT = 256          # per-branch feature width (image 256 + text 256 = 512)
N_PAD = 256         # classifier columns padded to the branch width (lane-dense,
                    # and lets w_comb pack into the same weight slab)
SUBLANE_BF16 = 16   # bf16 sublane tile; row-split points must be multiples of this


def _combined_kernel(x_ref, w_ref, b_ref, out_ref, *, k_img, k_txt):
    """x: (1, Kimg+Ktxt) bf16.  w: (Kimg+Ktxt+512, 256) bf16.  b: (3, 256) f32."""
    kc = k_img + k_txt

    # image_model: Flatten -> Linear -> ReLU   (bf16 MXU pass, f32 accumulate)
    f_img = jnp.dot(x_ref[:, :k_img], w_ref[:k_img, :],
                    preferred_element_type=jnp.float32) + b_ref[0:1, :]
    f_img = jnp.maximum(f_img, 0.0)

    # text_model: Flatten -> Linear -> ReLU
    f_txt = jnp.dot(x_ref[:, k_img:], w_ref[k_img:kc, :],
                    preferred_element_type=jnp.float32) + b_ref[1:2, :]
    f_txt = jnp.maximum(f_txt, 0.0)

    # concat((f_img, f_txt), dim=1) @ W_comb computed as a split matmul over
    # static views of the packed weight slab (no lane-concat shuffle).
    # Dropout(0.5) is identity at inference time.
    out = (jnp.dot(f_img.astype(jnp.bfloat16), w_ref[kc:kc + FEAT, :],
                   preferred_element_type=jnp.float32)
           + jnp.dot(f_txt.astype(jnp.bfloat16), w_ref[kc + FEAT:, :],
                     preferred_element_type=jnp.float32)
           + b_ref[2:3, :])
    out_ref[...] = out


def prepare_params(params):
    """One-time packing/casting — kept OUT of the per-call jit path."""
    k_img = params["w_img"].shape[0]
    k_txt = params["w_txt"].shape[0]
    num_classes = params["w_comb"].shape[1]

    # Zero-cost static view splits inside the kernel require tile-aligned
    # split points (bf16 sublane tile = 16 rows; lane split of x needs 128).
    assert params["w_img"].shape[1] == FEAT and params["w_txt"].shape[1] == FEAT
    assert params["w_comb"].shape[0] == 2 * FEAT
    assert k_img % 128 == 0, "image flatten width must be a lane multiple (128)"
    assert k_txt % SUBLANE_BF16 == 0, "text flatten width must be a multiple of 16"
    assert num_classes <= N_PAD

    w_comb = jnp.zeros((2 * FEAT, N_PAD), jnp.bfloat16)
    w_comb = w_comb.at[:, :num_classes].set(params["w_comb"].astype(jnp.bfloat16))

    # Single contiguous bf16 weight slab: [w_img ; w_txt ; w_comb_padded].
    w_all = jnp.concatenate(
        [params["w_img"].astype(jnp.bfloat16),
         params["w_txt"].astype(jnp.bfloat16),
         w_comb], axis=0)                                   # (Kimg+Ktxt+512, 256)

    # Single f32 bias slab: row 0 = b_img, row 1 = b_txt, row 2 = b_comb (padded).
    b_all = jnp.zeros((3, N_PAD), jnp.float32)
    b_all = b_all.at[0, :FEAT].set(params["b_img"])
    b_all = b_all.at[1, :FEAT].set(params["b_txt"])
    b_all = b_all.at[2, :num_classes].set(params["b_comb"])

    return {"w_all": w_all, "b_all": b_all,
            "k_img": k_img, "k_txt": k_txt, "num_classes": num_classes}


@functools.partial(jax.jit, static_argnames=("k_img", "k_txt", "num_classes"))
def _forward(ip_img, ip_txt, w_all, b_all, *, k_img, k_txt, num_classes):
    # Pack both flattened activations into ONE bf16 buffer -> one DMA descriptor.
    x = jnp.concatenate([ip_img.reshape(1, -1), ip_txt.reshape(1, -1)],
                        axis=1).astype(jnp.bfloat16)        # (1, Kimg+Ktxt)

    flops = 2 * (k_img * FEAT + k_txt * FEAT + 2 * FEAT * N_PAD)
    bytes_accessed = (w_all.size * 2          # bf16 weight slab
                      + x.size * 2            # bf16 activations
                      + b_all.size * 4        # f32 biases
                      + N_PAD * 4)            # f32 output

    kernel = functools.partial(_combined_kernel, k_img=k_img, k_txt=k_txt)
    vmem = pl.BlockSpec(memory_space=pltpu.MemorySpace.VMEM)
    out_pad = pl.pallas_call(
        kernel,
        out_shape=jax.ShapeDtypeStruct((1, N_PAD), jnp.float32),
        in_specs=[vmem, vmem, vmem],
        out_specs=vmem,
        cost_estimate=pl.CostEstimate(flops=flops, transcendentals=0,
                                      bytes_accessed=bytes_accessed),
    )(x, w_all, b_all)

    return out_pad[:, :num_classes]


def combined_forward(ip_img, ip_txt, prepared):
    """ip_img: (1, C, H, W) float32 (NCHW).  ip_txt: (seq, hidden) float32."""
    assert ip_img.shape[0] == 1, \
        "concat(dim=1) with unsqueeze(0) text output implies batch=1"
    return _forward(ip_img, ip_txt, prepared["w_all"], prepared["b_all"],
                    k_img=prepared["k_img"], k_txt=prepared["k_txt"],
                    num_classes=prepared["num_classes"])


def make_params(key, img_feat_in, txt_feat_in, num_classes):
    ks = jax.random.split(key, 6)
    scale = 0.02
    return {
        "w_img": scale * jax.random.normal(ks[0], (img_feat_in, FEAT), jnp.float32),
        "b_img": scale * jax.random.normal(ks[1], (FEAT,), jnp.float32),
        "w_txt": scale * jax.random.normal(ks[2], (txt_feat_in, FEAT), jnp.float32),
        "b_txt": scale * jax.random.normal(ks[3], (FEAT,), jnp.float32),
        "w_comb": scale * jax.random.normal(ks[4], (2 * FEAT, num_classes), jnp.float32),
        "b_comb": scale * jax.random.normal(ks[5], (num_classes,), jnp.float32),
    }


def reference_forward(ip_img, ip_txt, params):
    """Pure-JAX f32 reference mirroring the PyTorch forward (eval mode)."""
    f_img = jnp.maximum(ip_img.reshape(1, -1) @ params["w_img"] + params["b_img"], 0.0)
    f_txt = jnp.maximum(ip_txt.reshape(1, -1) @ params["w_txt"] + params["b_txt"], 0.0)
    op = jnp.concatenate([f_img, f_txt], axis=1)          # (1, 512)
    return op @ params["w_comb"] + params["b_comb"]       # Dropout == identity (eval)


if __name__ == "__main__":
    # Small shapes: batch=1 (forced by concat/unsqueeze semantics),
    # channels=4, spatial=16x16, seq=8, hidden=32, num_classes=10.
    C, H, W = 4, 16, 16
    SEQ, HID = 8, 32
    NUM_CLASSES = 10

    key = jax.random.PRNGKey(0)
    k_img, k_txt, k_par = jax.random.split(key, 3)

    ip_img = jax.random.normal(k_img, (1, C, H, W), jnp.float32)   # NCHW
    ip_txt = jax.random.normal(k_txt, (SEQ, HID), jnp.float32)

    params = make_params(k_par, C * H * W, SEQ * HID, NUM_CLASSES)

    # One-time weight packing / bf16 cast (outside the per-call jit path).
    prepared = jax.block_until_ready(prepare_params(params))

    out = combined_forward(ip_img, ip_txt, prepared)
    out = jax.block_until_ready(out)

    ref = reference_forward(ip_img, ip_txt, params)
    assert out.shape == (1, NUM_CLASSES)
    # bf16 weights/activations with f32 accumulation -> loosened tolerance
    # vs. the pure-f32 reference.
    assert jnp.allclose(out, ref, atol=3e-2, rtol=3e-2), (out, ref)

    print("KERNEL_OK")
</pallas_src>

<mosaic_0001>
module attributes {stable_mosaic.version = 11 : i64} {
  func.func @_combined_kernel(%arg0: memref<1x1280xbf16, #tpu.memory_space<vmem>>, %arg1: memref<1792x256xbf16, #tpu.memory_space<vmem>>, %arg2: memref<3x256xf32, #tpu.memory_space<vmem>>, %arg3: memref<1x256xf32, #tpu.memory_space<vmem>>) attributes {dimension_semantics = [], scalar_prefetch = 0 : i64, scratch_operands = 0 : i64, tpu.core_type = #tpu.core_type<tc>} {
    %c0 = arith.constant 0 : index
    %c0_0 = arith.constant 0 : index
    %0 = vector.load %arg0[%c0, %c0_0] : memref<1x1280xbf16, #tpu.memory_space<vmem>>, vector<1x1024xbf16>
    %c0_1 = arith.constant 0 : index
    %c0_2 = arith.constant 0 : index
    %1 = vector.load %arg1[%c0_1, %c0_2] : memref<1792x256xbf16, #tpu.memory_space<vmem>>, vector<1024x256xbf16>
    %cst = arith.constant dense<0.000000e+00> : vector<1x256xf32>
    %2 = tpu.matmul %0, %1, %cst {dimension_numbers = #tpu.dot_dimension_numbers<[1], [0], [0], [1], [0, 0, 1, 1], [], []>} : vector<1x1024xbf16>, vector<1024x256xbf16>, vector<1x256xf32> -> vector<1x256xf32>
    %c0_3 = arith.constant 0 : index
    %c0_4 = arith.constant 0 : index
    %3 = vector.load %arg2[%c0_3, %c0_4] : memref<3x256xf32, #tpu.memory_space<vmem>>, vector<1x256xf32>
    %4 = arith.addf %2, %3 : vector<1x256xf32>
    %cst_5 = arith.constant 0.000000e+00 : f32
    %5 = vector.broadcast %cst_5 : f32 to vector<1x256xf32>
    %6 = arith.maximumf %4, %5 : vector<1x256xf32>
    %c0_6 = arith.constant 0 : index
    %c1024 = arith.constant 1024 : index
    %7 = vector.load %arg0[%c0_6, %c1024] : memref<1x1280xbf16, #tpu.memory_space<vmem>>, vector<1x256xbf16>
    %c1024_7 = arith.constant 1024 : index
    %c0_8 = arith.constant 0 : index
    %8 = vector.load %arg1[%c1024_7, %c0_8] : memref<1792x256xbf16, #tpu.memory_space<vmem>>, vector<256x256xbf16>
    %cst_9 = arith.constant dense<0.000000e+00> : vector<1x256xf32>
    %9 = tpu.matmul %7, %8, %cst_9 {dimension_numbers = #tpu.dot_dimension_numbers<[1], [0], [0], [1], [0, 0, 1, 1], [], []>} : vector<1x256xbf16>, vector<256x256xbf16>, vector<1x256xf32> -> vector<1x256xf32>
    %c1 = arith.constant 1 : index
    %c0_10 = arith.constant 0 : index
    %10 = vector.load %arg2[%c1, %c0_10] : memref<3x256xf32, #tpu.memory_space<vmem>>, vector<1x256xf32>
    %11 = arith.addf %9, %10 : vector<1x256xf32>
    %cst_11 = arith.constant 0.000000e+00 : f32
    %12 = vector.broadcast %cst_11 : f32 to vector<1x256xf32>
    %13 = arith.maximumf %11, %12 : vector<1x256xf32>
    %14 = arith.truncf %6 : vector<1x256xf32> to vector<1x256xbf16>
    %c1280 = arith.constant 1280 : index
    %c0_12 = arith.constant 0 : index
    %15 = vector.load %arg1[%c1280, %c0_12] : memref<1792x256xbf16, #tpu.memory_space<vmem>>, vector<256x256xbf16>
    %cst_13 = arith.constant dense<0.000000e+00> : vector<1x256xf32>
    %16 = tpu.matmul %14, %15, %cst_13 {dimension_numbers = #tpu.dot_dimension_numbers<[1], [0], [0], [1], [0, 0, 1, 1], [], []>} : vector<1x256xbf16>, vector<256x256xbf16>, vector<1x256xf32> -> vector<1x256xf32>
    %17 = arith.truncf %13 : vector<1x256xf32> to vector<1x256xbf16>
    %c1536 = arith.constant 1536 : index
    %c0_14 = arith.constant 0 : index
    %18 = vector.load %arg1[%c1536, %c0_14] : memref<1792x256xbf16, #tpu.memory_space<vmem>>, vector<256x256xbf16>
    %cst_15 = arith.constant dense<0.000000e+00> : vector<1x256xf32>
    %19 = tpu.matmul %17, %18, %cst_15 {dimension_numbers = #tpu.dot_dimension_numbers<[1], [0], [0], [1], [0, 0, 1, 1], [], []>} : vector<1x256xbf16>, vector<256x256xbf16>, vector<1x256xf32> -> vector<1x256xf32>
    %20 = arith.addf %16, %19 : vector<1x256xf32>
    %c2 = arith.constant 2 : index
    %c0_16 = arith.constant 0 : index
    %21 = vector.load %arg2[%c2, %c0_16] : memref<3x256xf32, #tpu.memory_space<vmem>>, vector<1x256xf32>
    %22 = arith.addf %20, %21 : vector<1x256xf32>
    %c0_17 = arith.constant 0 : index
    %c0_18 = arith.constant 0 : index
    %23 = vector.load %arg3[%c0_17, %c0_18] : memref<1x256xf32, #tpu.memory_space<vmem>>, vector<1x256xf32>
    tpu.vector_store %arg3[%c0_17, %c0_18], %22 {strides = array<i32>} : memref<1x256xf32, #tpu.memory_space<vmem>>, vector<1x256xf32>,
    return
  }
}

</mosaic_0001>

<llo_original>
// kernel: _forward.1
$region0: #{_forward.1}
  #allocation0 [shape = 'u32[]', space=smem, size = 0x4, offset = 0x4, fixed_abs, tag = 'smem constant byte address 0x4 - core index']
  #allocation1 [shape = 'u32[144,128]{1,0:T(1,128)}', space=vmem, size = 0x12000, scoped, tag = 'internal scratch']
  %s0 = inlined_call_operand.vmem [shape: bf16[1,1280], index: 0, kind: input, shape index: {}]
  %s1 = inlined_call_operand.hbm [shape: bf16[1792,256], index: 1, kind: input, shape index: {}]
  %s2 = inlined_call_operand.vmem [shape: f32[3,256], index: 2, kind: input, shape index: {}]
  %s3 = inlined_call_operand.vmem [shape: f32[1,256], index: 3, kind: output, shape index: {}]
  %s4 = sld [smem:[#allocation0]]
  $region26: #{_forward.1} parent=0
    _
  %s6 = ssub.s32 1, %s4
  %s7 = scalar_select 0, %s6, %s4
  $region1: #{_forward.1} parent=0
    #allocation2 [shape = 'u8[917504]{0}', space=vmem, size = 0xe0000, scoped, tag = 'input window, operand 1, single buffered']
    #allocation3 [shape = 's32[1]{0}', space=sflag, size = 0x4, scoped, tag = 'scoped memory for _forward.1']
    %8 = vsyncpa [#allocation3], 0
    // Predicated region
    $region2: #{_forward.1} parent=1 // pred_check
      _
    $region3: #{_forward.1} parent=1 // pred_check_branch
      %10 = sbr.rel (0) target = $region5
    $region4: #{_forward.1} parent=1 // pred_region
      _
    $region5: #{_forward.1} parent=1 // pred_fallthru
      _
    // Predicated region
    $region6: #{_forward.1} parent=1 // pred_check
      _
    $region7: #{_forward.1} parent=1 // pred_check_branch
      %12 = sbr.rel (0) target = $region9
    $region8: #{_forward.1} parent=1 // pred_region
      %s14 = ssub.s32 28672, 28672
      %15 = vsyncadd [#allocation3], %s14
      %s16 = sshll.u32 [#allocation2], 4
      %s17 = int_to_ptr.vmem [resolvable:$true] %s16
      %22 = dma.hbm_to_vmem [thread:$0]  %s1, 28672, %s17, [#allocation3], 128, 128, 8
    $region9: #{_forward.1} parent=1 // pred_fallthru
      _
    // Predicated region
    $region10: #{_forward.1} parent=1 // pred_check
      _
    $region11: #{_forward.1} parent=1 // pred_check_branch
      %24 = sbr.rel (0) target = $region13
    $region12: #{_forward.1} parent=1 // pred_region
      _
    $region13: #{_forward.1} parent=1 // pred_fallthru
      _
    // Predicated region
    $region14: #{_forward.1} parent=1 // pred_check
      _
    $region15: #{_forward.1} parent=1 // pred_check_branch
      %26 = sbr.rel (0) target = $region17
    $region16: #{_forward.1} parent=1 // pred_region
      %27 = dma.done [#allocation3], 28672
    $region17: #{_forward.1} parent=1 // pred_fallthru
      _
    %v28 = vld [vmem:[%s0] sm:$0xff]
    %v29 = vld [vmem:[#allocation2] sm:$0xff]
    %v30 = vld [vmem:[#allocation2 + $0x8] sm:$0xff]
    %v31 = vld [vmem:[#allocation2 + $0x10] sm:$0xff]
    %v32 = vld [vmem:[#allocation2 + $0x18] sm:$0xff]
    %v33 = vld [vmem:[#allocation2 + $0x20] sm:$0xff]
    %v34 = vld [vmem:[#allocation2 + $0x28] sm:$0xff]
    %v35 = vld [vmem:[#allocation2 + $0x30] sm:$0xff]
    %v36 = vld [vmem:[#allocation2 + $0x38] sm:$0xff]
    %v37 = vld [vmem:[#allocation2 + $0x40] sm:$0xff]
    %v38 = vld [vmem:[#allocation2 + $0x48] sm:$0xff]
    %v39 = vld [vmem:[#allocation2 + $0x50] sm:$0xff]
    %v40 = vld [vmem:[#allocation2 + $0x58] sm:$0xff]
    %v41 = vld [vmem:[#allocation2 + $0x60] sm:$0xff]
    %v42 = vld [vmem:[#allocation2 + $0x68] sm:$0xff]
    %v43 = vld [vmem:[#allocation2 + $0x70] sm:$0xff]
    %v44 = vld [vmem:[#allocation2 + $0x78] sm:$0xff]
    %v45 = vld [vmem:[#allocation2 + $0x80] sm:$0xff]
    %v46 = vld [vmem:[#allocation2 + $0x88] sm:$0xff]
    %v47 = vld [vmem:[#allocation2 + $0x90] sm:$0xff]
    %v48 = vld [vmem:[#allocation2 + $0x98] sm:$0xff]
    %v49 = vld [vmem:[#allocation2 + $0xa0] sm:$0xff]
    %v50 = vld [vmem:[#allocation2 + $0xa8] sm:$0xff]
    %v51 = vld [vmem:[#allocation2 + $0xb0] sm:$0xff]
    %v52 = vld [vmem:[#allocation2 + $0xb8] sm:$0xff]
    %v53 = vld [vmem:[#allocation2 + $0xc0] sm:$0xff]
    %v54 = vld [vmem:[#allocation2 + $0xc8] sm:$0xff]
    %v55 = vld [vmem:[#allocation2 + $0xd0] sm:$0xff]
    %v56 = vld [vmem:[#allocation2 + $0xd8] sm:$0xff]
    %v57 = vld [vmem:[#allocation2 + $0xe0] sm:$0xff]
    %v58 = vld [vmem:[#allocation2 + $0xe8] sm:$0xff]
    %v59 = vld [vmem:[#allocation2 + $0xf0] sm:$0xff]
    %v60 = vld [vmem:[#allocation2 + $0xf8] sm:$0xff]
    %v61 = vld [vmem:[#allocation2 + $0x100] sm:$0xff]
    %v62 = vld [vmem:[#allocation2 + $0x108] sm:$0xff]
    %v63 = vld [vmem:[#allocation2 + $0x110] sm:$0xff]
    %v64 = vld [vmem:[#allocation2 + $0x118] sm:$0xff]
    %v65 = vld [vmem:[#allocation2 + $0x120] sm:$0xff]
    %v66 = vld [vmem:[#allocation2 + $0x128] sm:$0xff]
    %v67 = vld [vmem:[#allocation2 + $0x130] sm:$0xff]
    %v68 = vld [vmem:[#allocation2 + $0x138] sm:$0xff]
    %v69 = vld [vmem:[#allocation2 + $0x140] sm:$0xff]
    %v70 = vld [vmem:[#allocation2 + $0x148] sm:$0xff]
    %v71 = vld [vmem:[#allocation2 + $0x150] sm:$0xff]
    %v72 = vld [vmem:[#allocation2 + $0x158] sm:$0xff]
    %v73 = vld [vmem:[#allocation2 + $0x160] sm:$0xff]
    %v74 = vld [vmem:[#allocation2 + $0x168] sm:$0xff]
    %v75 = vld [vmem:[#allocation2 + $0x170] sm:$0xff]
    %v76 = vld [vmem:[#allocation2 + $0x178] sm:$0xff]
    %v77 = vld [vmem:[#allocation2 + $0x180] sm:$0xff]
    %v78 = vld [vmem:[#allocation2 + $0x188] sm:$0xff]
    %v79 = vld [vmem:[#allocation2 + $0x190] sm:$0xff]
    %v80 = vld [vmem:[#allocation2 + $0x198] sm:$0xff]
    %v81 = vld [vmem:[#allocation2 + $0x1a0] sm:$0xff]
    %v82 = vld [vmem:[#allocation2 + $0x1a8] sm:$0xff]
    %v83 = vld [vmem:[#allocation2 + $0x1b0] sm:$0xff]
    %v84 = vld [vmem:[#allocation2 + $0x1b8] sm:$0xff]
    %v85 = vld [vmem:[#allocation2 + $0x1c0] sm:$0xff]
    %v86 = vld [vmem:[#allocation2 + $0x1c8] sm:$0xff]
    %v87 = vld [vmem:[#allocation2 + $0x1d0] sm:$0xff]
    %v88 = vld [vmem:[#allocation2 + $0x1d8] sm:$0xff]
    %v89 = vld [vmem:[#allocation2 + $0x1e0] sm:$0xff]
    %v90 = vld [vmem:[#allocation2 + $0x1e8] sm:$0xff]
    %v91 = vld [vmem:[#allocation2 + $0x1f0] sm:$0xff]
    %v92 = vld [vmem:[#allocation2 + $0x1f8] sm:$0xff]
    %v93 = vld [vmem:[#allocation2 + $0x200] sm:$0xff]
    %v94 = vld [vmem:[#allocation2 + $0x208] sm:$0xff]
    %v95 = vld [vmem:[#allocation2 + $0x210] sm:$0xff]
    %v96 = vld [vmem:[#allocation2 + $0x218] sm:$0xff]
    %v97 = vld [vmem:[#allocation2 + $0x220] sm:$0xff]
    %v98 = vld [vmem:[#allocation2 + $0x228] sm:$0xff]
    %v99 = vld [vmem:[#allocation2 + $0x230] sm:$0xff]
    %v100 = vld [vmem:[#allocation2 + $0x238] sm:$0xff]
    %v101 = vld [vmem:[#allocation2 + $0x240] sm:$0xff]
    %v102 = vld [vmem:[#allocation2 + $0x248] sm:$0xff]
    %v103 = vld [vmem:[#allocation2 + $0x250] sm:$0xff]
    %v104 = vld [vmem:[#allocation2 + $0x258] sm:$0xff]
    %v105 = vld [vmem:[#allocation2 + $0x260] sm:$0xff]
    %v106 = vld [vmem:[#allocation2 + $0x268] sm:$0xff]
    %v107 = vld [vmem:[#allocation2 + $0x270] sm:$0xff]
    %v108 = vld [vmem:[#allocation2 + $0x278] sm:$0xff]
    %v109 = vld [vmem:[#allocation2 + $0x280] sm:$0xff]
    %v110 = vld [vmem:[#allocation2 + $0x288] sm:$0xff]
    %v111 = vld [vmem:[#allocation2 + $0x290] sm:$0xff]
    %v112 = vld [vmem:[#allocation2 + $0x298] sm:$0xff]
    %v113 = vld [vmem:[#allocation2 + $0x2a0] sm:$0xff]
    %v114 = vld [vmem:[#allocation2 + $0x2a8] sm:$0xff]
    %v115 = vld [vmem:[#allocation2 + $0x2b0] sm:$0xff]
    %v116 = vld [vmem:[#allocation2 + $0x2b8] sm:$0xff]
    %v117 = vld [vmem:[#allocation2 + $0x2c0] sm:$0xff]
    %v118 = vld [vmem:[#allocation2 + $0x2c8] sm:$0xff]
    %v119 = vld [vmem:[#allocation2 + $0x2d0] sm:$0xff]
    %v120 = vld [vmem:[#allocation2 + $0x2d8] sm:$0xff]
    %v121 = vld [vmem:[#allocation2 + $0x2e0] sm:$0xff]
    %v122 = vld [vmem:[#allocation2 + $0x2e8] sm:$0xff]
    %v123 = vld [vmem:[#allocation2 + $0x2f0] sm:$0xff]
    %v124 = vld [vmem:[#allocation2 + $0x2f8] sm:$0xff]
    %v125 = vld [vmem:[#allocation2 + $0x300] sm:$0xff]
    %v126 = vld [vmem:[#allocation2 + $0x308] sm:$0xff]
    %v127 = vld [vmem:[#allocation2 + $0x310] sm:$0xff]
    %v128 = vld [vmem:[#allocation2 + $0x318] sm:$0xff]
    %v129 = vld [vmem:[#allocation2 + $0x320] sm:$0xff]
    %v130 = vld [vmem:[#allocation2 + $0x328] sm:$0xff]
    %v131 = vld [vmem:[#allocation2 + $0x330] sm:$0xff]
    %v132 = vld [vmem:[#allocation2 + $0x338] sm:$0xff]
    %v133 = vld [vmem:[#allocation2 + $0x340] sm:$0xff]
    %v134 = vld [vmem:[#allocation2 + $0x348] sm:$0xff]
    %v135 = vld [vmem:[#allocation2 + $0x350] sm:$0xff]
    %v136 = vld [vmem:[#allocation2 + $0x358] sm:$0xff]
    %v137 = vld [vmem:[#allocation2 + $0x360] sm:$0xff]
    %v138 = vld [vmem:[#allocation2 + $0x368] sm:$0xff]
    %v139 = vld [vmem:[#allocation2 + $0x370] sm:$0xff]
    %v140 = vld [vmem:[#allocation2 + $0x378] sm:$0xff]
    %v141 = vld [vmem:[#allocation2 + $0x380] sm:$0xff]
    %v142 = vld [vmem:[#allocation2 + $0x388] sm:$0xff]
    %v143 = vld [vmem:[#allocation2 + $0x390] sm:$0xff]
    %v144 = vld [vmem:[#allocation2 + $0x398] sm:$0xff]
    %v145 = vld [vmem:[#allocation2 + $0x3a0] sm:$0xff]
    %v146 = vld [vmem:[#allocation2 + $0x3a8] sm:$0xff]
    %v147 = vld [vmem:[#allocation2 + $0x3b0] sm:$0xff]
    %v148 = vld [vmem:[#allocation2 + $0x3b8] sm:$0xff]
    %v149 = vld [vmem:[#allocation2 + $0x3c0] sm:$0xff]
    %v150 = vld [vmem:[#allocation2 + $0x3c8] sm:$0xff]
    %v151 = vld [vmem:[#allocation2 + $0x3d0] sm:$0xff]
    %v152 = vld [vmem:[#allocation2 + $0x3d8] sm:$0xff]
    %v153 = vld [vmem:[#allocation2 + $0x3e0] sm:$0xff]
    %v154 = vld [vmem:[#allocation2 + $0x3e8] sm:$0xff]
    %v155 = vld [vmem:[#allocation2 + $0x3f0] sm:$0xff]
    %v156 = vld [vmem:[#allocation2 + $0x3f8] sm:$0xff]
    %v157 = vld [vmem:[%s2] ss:$4 sm:$0x3]
    %v159 = vcombine.high %v28, %v28
    %v161 = vunpack.c.l.s4 1966171168
    %v162 = vunpack.c.0.s8 %v161
    %v163 = vlaneseq
    %v164 = vshrl.u32 %v163, 7
    %v165 = vsub.s32 %v162, %v164
    %v166 = vrot.slane %v28, %v165
    %v168 = vunpack.c.l.s4 1966171168
    %v169 = vunpack.c.0.s8 %v168
    %v170 = vlaneseq
    %v171 = vshrl.u32 %v170, 7
    %v172 = vsub.s32 %v169, %v171
    %v173 = vrot.slane %v159, %v172
    %v174 = vcombine.high %v166, %v166
    %v175 = vcombine.high %v173, %v173
    %v177 = vunpack.c.l.s4 1966171168
    %v178 = vunpack.c.0.s8 %v177
    %v179 = vlaneseq
    %v180 = vshrl.u32 %v179, 7
    %v181 = vsub.s32 %v178, %v180
    %v182 = vrot.slane %v166, %v181
    %v184 = vunpack.c.l.s4 1966171168
    %v185 = vunpack.c.0.s8 %v184
    %v186 = vlaneseq
    %v187 = vshrl.u32 %v186, 7
    %v188 = vsub.s32 %v185, %v187
    %v189 = vrot.slane %v173, %v188
    %v191 = vunpack.c.l.s4 1966171168
    %v192 = vunpack.c.0.s8 %v191
    %v193 = vlaneseq
    %v194 = vshrl.u32 %v193, 7
    %v195 = vsub.s32 %v192, %v194
    %v196 = vrot.slane %v174, %v195
    %v198 = vunpack.c.l.s4 1966171168
    %v199 = vunpack.c.0.s8 %v198
    %v200 = vlaneseq
    %v201 = vshrl.u32 %v200, 7
    %v202 = vsub.s32 %v199, %v201
    %v203 = vrot.slane %v175, %v202
    %v204 = vcombine.high %v182, %v182
    %v205 = vcombine.high %v189, %v189
    %v206 = vcombine.high %v196, %v196
    %v207 = vcombine.high %v203, %v203
    %v344 = vunpack.c.l.b16 %v29
    %v345 = vunpack.c.h.b16 %v29
    %v346 = vunpack.c.l.b16 %v30
    %v347 = vunpack.c.h.b16 %v30
    %v348 = vunpack.c.l.b16 %v31
    %v349 = vunpack.c.h.b16 %v31
    %v350 = vunpack.c.l.b16 %v32
    %v351 = vunpack.c.h.b16 %v32
    %v352 = vunpack.c.l.b16 %v33
    %v353 = vunpack.c.h.b16 %v33
    %v354 = vunpack.c.l.b16 %v34
    %v355 = vunpack.c.h.b16 %v34
    %v356 = vunpack.c.l.b16 %v35
    %v357 = vunpack.c.h.b16 %v35
    %v358 = vunpack.c.l.b16 %v36
    %v359 = vunpack.c.h.b16 %v36
    %v360 = vunpack.c.l.b16 %v37
    %v361 = vunpack.c.h.b16 %v37
    %v362 = vunpack.c.l.b16 %v38
    %v363 = vunpack.c.h.b16 %v38
    %v364 = vunpack.c.l.b16 %v39
    %v365 = vunpack.c.h.b16 %v39
    %v366 = vunpack.c.l.b16 %v40
    %v367 = vunpack.c.h.b16 %v40
    %v368 = vunpack.c.l.b16 %v41
    %v369 = vunpack.c.h.b16 %v41
    %v370 = vunpack.c.l.b16 %v42
    %v371 = vunpack.c.h.b16 %v42
    %v372 = vunpack.c.l.b16 %v43
    %v373 = vunpack.c.h.b16 %v43
    %v374 = vunpack.c.l.b16 %v44
    %v375 = vunpack.c.h.b16 %v44
    %v376 = vunpack.c.l.b16 %v45
    %v377 = vunpack.c.h.b16 %v45
    %v378 = vunpack.c.l.b16 %v46
    %v379 = vunpack.c.h.b16 %v46
    %v380 = vunpack.c.l.b16 %v47
    %v381 = vunpack.c.h.b16 %v47
    %v382 = vunpack.c.l.b16 %v48
    %v383 = vunpack.c.h.b16 %v48
    %v384 = vunpack.c.l.b16 %v49
    %v385 = vunpack.c.h.b16 %v49
    %v386 = vunpack.c.l.b16 %v50
    %v387 = vunpack.c.h.b16 %v50
    %v388 = vunpack.c.l.b16 %v51
    %v389 = vunpack.c.h.b16 %v51
    %v390 = vunpack.c.l.b16 %v52
    %v391 = vunpack.c.h.b16 %v52
    %v392 = vunpack.c.l.b16 %v53
    %v393 = vunpack.c.h.b16 %v53
    %v394 = vunpack.c.l.b16 %v54
    %v395 = vunpack.c.h.b16 %v54
    %v396 = vunpack.c.l.b16 %v55
    %v397 = vunpack.c.h.b16 %v55
    %v398 = vunpack.c.l.b16 %v56
    %v399 = vunpack.c.h.b16 %v56
    %v400 = vunpack.c.l.b16 %v57
    %v401 = vunpack.c.h.b16 %v57
    %v402 = vunpack.c.l.b16 %v58
    %v403 = vunpack.c.h.b16 %v58
    %v404 = vunpack.c.l.b16 %v59
    %v405 = vunpack.c.h.b16 %v59
    %v406 = vunpack.c.l.b16 %v60
    %v407 = vunpack.c.h.b16 %v60
    %v408 = vunpack.c.l.b16 %v61
    %v409 = vunpack.c.h.b16 %v61
    %v410 = vunpack.c.l.b16 %v62
    %v411 = vunpack.c.h.b16 %v62
    %v412 = vunpack.c.l.b16 %v63
    %v413 = vunpack.c.h.b16 %v63
    %v414 = vunpack.c.l.b16 %v64
    %v415 = vunpack.c.h.b16 %v64
    %v416 = vunpack.c.l.b16 %v65
    %v417 = vunpack.c.h.b16 %v65
    %v418 = vunpack.c.l.b16 %v66
    %v419 = vunpack.c.h.b16 %v66
    %v420 = vunpack.c.l.b16 %v67
    %v421 = vunpack.c.h.b16 %v67
    %v422 = vunpack.c.l.b16 %v68
    %v423 = vunpack.c.h.b16 %v68
    %v424 = vunpack.c.l.b16 %v69
    %v425 = vunpack.c.h.b16 %v69
    %v426 = vunpack.c.l.b16 %v70
    %v427 = vunpack.c.h.b16 %v70
    %v428 = vunpack.c.l.b16 %v71
    %v429 = vunpack.c.h.b16 %v71
    %v430 = vunpack.c.l.b16 %v72
    %v431 = vunpack.c.h.b16 %v72
    %v432 = vunpack.c.l.b16 %v73
    %v433 = vunpack.c.h.b16 %v73
    %v434 = vunpack.c.l.b16 %v74
    %v435 = vunpack.c.h.b16 %v74
    %v436 = vunpack.c.l.b16 %v75
    %v437 = vunpack.c.h.b16 %v75
    %v438 = vunpack.c.l.b16 %v76
    %v439 = vunpack.c.h.b16 %v76
    %v440 = vunpack.c.l.b16 %v77
    %v441 = vunpack.c.h.b16 %v77
    %v442 = vunpack.c.l.b16 %v78
    %v443 = vunpack.c.h.b16 %v78
    %v444 = vunpack.c.l.b16 %v79
    %v445 = vunpack.c.h.b16 %v79
    %v446 = vunpack.c.l.b16 %v80
    %v447 = vunpack.c.h.b16 %v80
    %v448 = vunpack.c.l.b16 %v81
    %v449 = vunpack.c.h.b16 %v81
    %v450 = vunpack.c.l.b16 %v82
    %v451 = vunpack.c.h.b16 %v82
    %v452 = vunpack.c.l.b16 %v83
    %v453 = vunpack.c.h.b16 %v83
    %v454 = vunpack.c.l.b16 %v84
    %v455 = vunpack.c.h.b16 %v84
    %v456 = vunpack.c.l.b16 %v85
    %v457 = vunpack.c.h.b16 %v85
    %v458 = vunpack.c.l.b16 %v86
    %v459 = vunpack.c.h.b16 %v86
    %v460 = vunpack.c.l.b16 %v87
    %v461 = vunpack.c.h.b16 %v87
    %v462 = vunpack.c.l.b16 %v88
    %v463 = vunpack.c.h.b16 %v88
    %v464 = vunpack.c.l.b16 %v89
    %v465 = vunpack.c.h.b16 %v89
    %v466 = vunpack.c.l.b16 %v90
    %v467 = vunpack.c.h.b16 %v90
    %v468 = vunpack.c.l.b16 %v91
    %v469 = vunpack.c.h.b16 %v91
    %v470 = vunpack.c.l.b16 %v92
    %v471 = vunpack.c.h.b16 %v92
    %v472 = vunpack.c.l.b16 %v93
    %v473 = vunpack.c.h.b16 %v93
    %v474 = vunpack.c.l.b16 %v94
    %v475 = vunpack.c.h.b16 %v94
    %v476 = vunpack.c.l.b16 %v95
    %v477 = vunpack.c.h.b16 %v95
    %v478 = vunpack.c.l.b16 %v96
    %v479 = vunpack.c.h.b16 %v96
    %v480 = vunpack.c.l.b16 %v97
    %v481 = vunpack.c.h.b16 %v97
    %v482 = vunpack.c.l.b16 %v98
    %v483 = vunpack.c.h.b16 %v98
    %v484 = vunpack.c.l.b16 %v99
    %v485 = vunpack.c.h.b16 %v99
    %v486 = vunpack.c.l.b16 %v100
    %v487 = vunpack.c.h.b16 %v100
    %v488 = vunpack.c.l.b16 %v101
    %v489 = vunpack.c.h.b16 %v101
    %v490 = vunpack.c.l.b16 %v102
    %v491 = vunpack.c.h.b16 %v102
    %v492 = vunpack.c.l.b16 %v103
    %v493 = vunpack.c.h.b16 %v103
    %v494 = vunpack.c.l.b16 %v104
    %v495 = vunpack.c.h.b16 %v104
    %v496 = vunpack.c.l.b16 %v105
    %v497 = vunpack.c.h.b16 %v105
    %v498 = vunpack.c.l.b16 %v106
    %v499 = vunpack.c.h.b16 %v106
    %v500 = vunpack.c.l.b16 %v107
    %v501 = vunpack.c.h.b16 %v107
    %v502 = vunpack.c.l.b16 %v108
    %v503 = vunpack.c.h.b16 %v108
    %v504 = vunpack.c.l.b16 %v109
    %v505 = vunpack.c.h.b16 %v109
    %v506 = vunpack.c.l.b16 %v110
    %v507 = vunpack.c.h.b16 %v110
    %v508 = vunpack.c.l.b16 %v111
    %v509 = vunpack.c.h.b16 %v111
    %v510 = vunpack.c.l.b16 %v112
    %v511 = vunpack.c.h.b16 %v112
    %v512 = vunpack.c.l.b16 %v113
    %v513 = vunpack.c.h.b16 %v113
    %v514 = vunpack.c.l.b16 %v114
    %v515 = vunpack.c.h.b16 %v114
    %v516 = vunpack.c.l.b16 %v115
    %v517 = vunpack.c.h.b16 %v115
    %v518 = vunpack.c.l.b16 %v116
    %v519 = vunpack.c.h.b16 %v116
    %v520 = vunpack.c.l.b16 %v117
    %v521 = vunpack.c.h.b16 %v117
    %v522 = vunpack.c.l.b16 %v118
    %v523 = vunpack.c.h.b16 %v118
    %v524 = vunpack.c.l.b16 %v119
    %v525 = vunpack.c.h.b16 %v119
    %v526 = vunpack.c.l.b16 %v120
    %v527 = vunpack.c.h.b16 %v120
    %v528 = vunpack.c.l.b16 %v121
    %v529 = vunpack.c.h.b16 %v121
    %v530 = vunpack.c.l.b16 %v122
    %v531 = vunpack.c.h.b16 %v122
    %v532 = vunpack.c.l.b16 %v123
    %v533 = vunpack.c.h.b16 %v123
    %v534 = vunpack.c.l.b16 %v124
    %v535 = vunpack.c.h.b16 %v124
    %v536 = vunpack.c.l.b16 %v125
    %v537 = vunpack.c.h.b16 %v125
    %v538 = vunpack.c.l.b16 %v126
    %v539 = vunpack.c.h.b16 %v126
    %v540 = vunpack.c.l.b16 %v127
    %v541 = vunpack.c.h.b16 %v127
    %v542 = vunpack.c.l.b16 %v128
    %v543 = vunpack.c.h.b16 %v128
    %v544 = vunpack.c.l.b16 %v129
    %v545 = vunpack.c.h.b16 %v129
    %v546 = vunpack.c.l.b16 %v130
    %v547 = vunpack.c.h.b16 %v130
    %v548 = vunpack.c.l.b16 %v131
    %v549 = vunpack.c.h.b16 %v131
    %v550 = vunpack.c.l.b16 %v132
    %v551 = vunpack.c.h.b16 %v132
    %v552 = vunpack.c.l.b16 %v133
    %v553 = vunpack.c.h.b16 %v133
    %v554 = vunpack.c.l.b16 %v134
    %v555 = vunpack.c.h.b16 %v134
    %v556 = vunpack.c.l.b16 %v135
    %v557 = vunpack.c.h.b16 %v135
    %v558 = vunpack.c.l.b16 %v136
    %v559 = vunpack.c.h.b16 %v136
    %v560 = vunpack.c.l.b16 %v137
    %v561 = vunpack.c.h.b16 %v137
    %v562 = vunpack.c.l.b16 %v138
    %v563 = vunpack.c.h.b16 %v138
    %v564 = vunpack.c.l.b16 %v139
    %v565 = vunpack.c.h.b16 %v139
    %v566 = vunpack.c.l.b16 %v140
    %v567 = vunpack.c.h.b16 %v140
    %v568 = vunpack.c.l.b16 %v141
    %v569 = vunpack.c.h.b16 %v141
    %v570 = vunpack.c.l.b16 %v142
    %v571 = vunpack.c.h.b16 %v142
    %v572 = vunpack.c.l.b16 %v143
    %v573 = vunpack.c.h.b16 %v143
    %v574 = vunpack.c.l.b16 %v144
    %v575 = vunpack.c.h.b16 %v144
    %v576 = vunpack.c.l.b16 %v145
    %v577 = vunpack.c.h.b16 %v145
    %v578 = vunpack.c.l.b16 %v146
    %v579 = vunpack.c.h.b16 %v146
    %v580 = vunpack.c.l.b16 %v147
    %v581 = vunpack.c.h.b16 %v147
    %v582 = vunpack.c.l.b16 %v148
    %v583 = vunpack.c.h.b16 %v148
    %v584 = vunpack.c.l.b16 %v149
    %v585 = vunpack.c.h.b16 %v149
    %v586 = vunpack.c.l.b16 %v150
    %v587 = vunpack.c.h.b16 %v150
    %v588 = vunpack.c.l.b16 %v151
    %v589 = vunpack.c.h.b16 %v151
    %v590 = vunpack.c.l.b16 %v152
    %v591 = vunpack.c.h.b16 %v152
    %v592 = vunpack.c.l.b16 %v153
    %v593 = vunpack.c.h.b16 %v153
    %v594 = vunpack.c.l.b16 %v154
    %v595 = vunpack.c.h.b16 %v154
    %v596 = vunpack.c.l.b16 %v155
    %v597 = vunpack.c.h.b16 %v155
    %v598 = vunpack.c.l.b16 %v156
    %v599 = vunpack.c.h.b16 %v156
    %v600 = vpack.c.b16 %v346, %v344
    %v601 = vpack.c.b16 %v347, %v345
    %v602 = vpack.c.b16 %v350, %v348
    %v603 = vpack.c.b16 %v351, %v349
    %v604 = vpack.c.b16 %v354, %v352
    %v605 = vpack.c.b16 %v355, %v353
    %v606 = vpack.c.b16 %v358, %v356
    %v607 = vpack.c.b16 %v359, %v357
    %v608 = vpack.c.b16 %v362, %v360
    %v609 = vpack.c.b16 %v363, %v361
    %v610 = vpack.c.b16 %v366, %v364
    %v611 = vpack.c.b16 %v367, %v365
    %v612 = vpack.c.b16 %v370, %v368
    %v613 = vpack.c.b16 %v371, %v369
    %v614 = vpack.c.b16 %v374, %v372
    %v615 = vpack.c.b16 %v375, %v373
    %v616 = vpack.c.b16 %v378, %v376
    %v617 = vpack.c.b16 %v379, %v377
    %v618 = vpack.c.b16 %v382, %v380
    %v619 = vpack.c.b16 %v383, %v381
    %v620 = vpack.c.b16 %v386, %v384
    %v621 = vpack.c.b16 %v387, %v385
    %v622 = vpack.c.b16 %v390, %v388
    %v623 = vpack.c.b16 %v391, %v389
    %v624 = vpack.c.b16 %v394, %v392
    %v625 = vpack.c.b16 %v395, %v393
    %v626 = vpack.c.b16 %v398, %v396
    %v627 = vpack.c.b16 %v399, %v397
    %v628 = vpack.c.b16 %v402, %v400
    %v629 = vpack.c.b16 %v403, %v401
    %v630 = vpack.c.b16 %v406, %v404
    %v631 = vpack.c.b16 %v407, %v405
    %v632 = vpack.c.b16 %v410, %v408
    %v633 = vpack.c.b16 %v411, %v409
    %v634 = vpack.c.b16 %v414, %v412
    %v635 = vpack.c.b16 %v415, %v413
    %v636 = vpack.c.b16 %v418, %v416
    %v637 = vpack.c.b16 %v419, %v417
    %v638 = vpack.c.b16 %v422, %v420
    %v639 = vpack.c.b16 %v423, %v421
    %v640 = vpack.c.b16 %v426, %v424
    %v641 = vpack.c.b16 %v427, %v425
    %v642 = vpack.c.b16 %v430, %v428
    %v643 = vpack.c.b16 %v431, %v429
    %v644 = vpack.c.b16 %v434, %v432
    %v645 = vpack.c.b16 %v435, %v433
    %v646 = vpack.c.b16 %v438, %v436
    %v647 = vpack.c.b16 %v439, %v437
    %v648 = vpack.c.b16 %v442, %v440
    %v649 = vpack.c.b16 %v443, %v441
    %v650 = vpack.c.b16 %v446, %v444
    %v651 = vpack.c.b16 %v447, %v445
    %v652 = vpack.c.b16 %v450, %v448
    %v653 = vpack.c.b16 %v451, %v449
    %v654 = vpack.c.b16 %v454, %v452
    %v655 = vpack.c.b16 %v455, %v453
    %v656 = vpack.c.b16 %v458, %v456
    %v657 = vpack.c.b16 %v459, %v457
    %v658 = vpack.c.b16 %v462, %v460
    %v659 = vpack.c.b16 %v463, %v461
    %v660 = vpack.c.b16 %v466, %v464
    %v661 = vpack.c.b16 %v467, %v465
    %v662 = vpack.c.b16 %v470, %v468
    %v663 = vpack.c.b16 %v471, %v469
    %v664 = vpack.c.b16 %v474, %v472
    %v665 = vpack.c.b16 %v475, %v473
    %v666 = vpack.c.b16 %v478, %v476
    %v667 = vpack.c.b16 %v479, %v477
    %v668 = vpack.c.b16 %v482, %v480
    %v669 = vpack.c.b16 %v483, %v481
    %v670 = vpack.c.b16 %v486, %v484
    %v671 = vpack.c.b16 %v487, %v485
    %v672 = vpack.c.b16 %v490, %v488
    %v673 = vpack.c.b16 %v491, %v489
    %v674 = vpack.c.b16 %v494, %v492
    %v675 = vpack.c.b16 %v495, %v493
    %v676 = vpack.c.b16 %v498, %v496
    %v677 = vpack.c.b16 %v499, %v497
    %v678 = vpack.c.b16 %v502, %v500
    %v679 = vpack.c.b16 %v503, %v501
    %v680 = vpack.c.b16 %v506, %v504
    %v681 = vpack.c.b16 %v507, %v505
    %v682 = vpack.c.b16 %v510, %v508
    %v683 = vpack.c.b16 %v511, %v509
    %v684 = vpack.c.b16 %v514, %v512
    %v685 = vpack.c.b16 %v515, %v513
    %v686 = vpack.c.b16 %v518, %v516
    %v687 = vpack.c.b16 %v519, %v517
    %v688 = vpack.c.b16 %v522, %v520
    %v689 = vpack.c.b16 %v523, %v521
    %v690 = vpack.c.b16 %v526, %v524
    %v691 = vpack.c.b16 %v527, %v525
    %v692 = vpack.c.b16 %v530, %v528
    %v693 = vpack.c.b16 %v531, %v529
    %v694 = vpack.c.b16 %v534, %v532
    %v695 = vpack.c.b16 %v535, %v533
    %v696 = vpack.c.b16 %v538, %v536
    %v697 = vpack.c.b16 %v539, %v537
    %v698 = vpack.c.b16 %v542, %v540
    %v699 = vpack.c.b16 %v543, %v541
    %v700 = vpack.c.b16 %v546, %v544
    %v701 = vpack.c.b16 %v547, %v545
    %v702 = vpack.c.b16 %v550, %v548
    %v703 = vpack.c.b16 %v551, %v549
    %v704 = vpack.c.b16 %v554, %v552
    %v705 = vpack.c.b16 %v555, %v553
    %v706 = vpack.c.b16 %v558, %v556
    %v707 = vpack.c.b16 %v559, %v557
    %v708 = vpack.c.b16 %v562, %v560
    %v709 = vpack.c.b16 %v563, %v561
    %v710 = vpack.c.b16 %v566, %v564
    %v711 = vpack.c.b16 %v567, %v565
    %v712 = vpack.c.b16 %v570, %v568
    %v713 = vpack.c.b16 %v571, %v569
    %v714 = vpack.c.b16 %v574, %v572
    %v715 = vpack.c.b16 %v575, %v573
    %v716 = vpack.c.b16 %v578, %v576
    %v717 = vpack.c.b16 %v579, %v577
    %v718 = vpack.c.b16 %v582, %v580
    %v719 = vpack.c.b16 %v583, %v581
    %v720 = vpack.c.b16 %v586, %v584
    %v721 = vpack.c.b16 %v587, %v585
    %v722 = vpack.c.b16 %v590, %v588
    %v723 = vpack.c.b16 %v591, %v589
    %v724 = vpack.c.b16 %v594, %v592
    %v725 = vpack.c.b16 %v595, %v593
    %v726 = vpack.c.b16 %v598, %v596
    %v727 = vpack.c.b16 %v599, %v597
    %v857 = vlaneseq
    %v858 = vshrl.u32 %v857, 7
    %v859 = vsub.s32 0, %v858
    %v860 = vrot.slane %v157, %v859
    %v861 = vlaneseq
    %v862 = vshrl.u32 %v861, 7
    %v863 = vsub.s32 1, %v862
    %v864 = vrot.slane %v157, %v863
    %867 = vmatprep.subr.bf16.mxu0 %v601
    %868 = vmatpush1.bf16.msra.mxu0 %v600
    %869 = vmatprep.subr.bf16.mxu0 %v603
    %870 = vmatpush1.bf16.msra.mxu0 %v602
    %871 = vmatprep.subr.bf16.mxu0 %v605
    %872 = vmatpush1.bf16.msra.mxu0 %v604
    %873 = vmatprep.subr.bf16.mxu0 %v607
    %874 = vmatpush1.bf16.msra.mxu0 %v606
    %875 = vmatprep.subr.bf16.mxu0 %v609
    %876 = vmatpush1.bf16.msra.mxu0 %v608
    %877 = vmatprep.subr.bf16.mxu0 %v611
    %878 = vmatpush1.bf16.msra.mxu0 %v610
    %879 = vmatprep.subr.bf16.mxu0 %v613
    %880 = vmatpush1.bf16.msra.mxu0 %v612
    %881 = vmatprep.subr.bf16.mxu0 %v615
    %882 = vmatpush1.bf16.msra.mxu0 %v614
    %883 = vmatprep.subr.bf16.mxu0 %v617
    %884 = vmatpush1.bf16.msra.mxu0 %v616
    %885 = vmatprep.subr.bf16.mxu0 %v619
    %886 = vmatpush1.bf16.msra.mxu0 %v618
    %887 = vmatprep.subr.bf16.mxu0 %v621
    %888 = vmatpush1.bf16.msra.mxu0 %v620
    %889 = vmatprep.subr.bf16.mxu0 %v623
    %890 = vmatpush1.bf16.msra.mxu0 %v622
    %891 = vmatprep.subr.bf16.mxu0 %v625
    %892 = vmatpush1.bf16.msra.mxu0 %v624
    %893 = vmatprep.subr.bf16.mxu0 %v627
    %894 = vmatpush1.bf16.msra.mxu0 %v626
    %895 = vmatprep.subr.bf16.mxu0 %v629
    %896 = vmatpush1.bf16.msra.mxu0 %v628
    %897 = vmatprep.subr.bf16.mxu0 %v631
    %898 = vmatpush1.bf16.msra.mxu0 %v630
    %899 = vmatprep.mubr.bf16.mxu0 %v196
    %900 = vmatmul.mubr.bf16.gmra.mrb[0].mxu0 %v182
    %v901 = vpop.f32.mrb[0].mxu0
    %v902 = vadd.f32 %v860, %v901
    %v903 = vpop.f32.mrb[0].mxu0
    %v904 = vadd.f32 %v864, %v903
    %v905 = vpop.f32.mrb[0].mxu0
    %v906 = vpop.f32.mrb[0].mxu0
    %907 = vdwg.mxu0
    %908 = vmatprep.subr.bf16.mxu0 %v633
    %909 = vmatpush1.bf16.msra.mxu0 %v632
    %910 = vmatprep.subr.bf16.mxu0 %v635
    %911 = vmatpush1.bf16.msra.mxu0 %v634
    %912 = vmatprep.subr.bf16.mxu0 %v637
    %913 = vmatpush1.bf16.msra.mxu0 %v636
    %914 = vmatprep.subr.bf16.mxu0 %v639
    %915 = vmatpush1.bf16.msra.mxu0 %v638
    %916 = vmatprep.subr.bf16.mxu0 %v641
    %917 = vmatpush1.bf16.msra.mxu0 %v640
    %918 = vmatprep.subr.bf16.mxu0 %v643
    %919 = vmatpush1.bf16.msra.mxu0 %v642
    %920 = vmatprep.subr.bf16.mxu0 %v645
    %921 = vmatpush1.bf16.msra.mxu0 %v644
    %922 = vmatprep.subr.bf16.mxu0 %v647
    %923 = vmatpush1.bf16.msra.mxu0 %v646
    %924 = vmatprep.subr.bf16.mxu0 %v649
    %925 = vmatpush1.bf16.msra.mxu0 %v648
    %926 = vmatprep.subr.bf16.mxu0 %v651
    %927 = vmatpush1.bf16.msra.mxu0 %v650
    %928 = vmatprep.subr.bf16.mxu0 %v653
    %929 = vmatpush1.bf16.msra.mxu0 %v652
    %930 = vmatprep.subr.bf16.mxu0 %v655
    %931 = vmatpush1.bf16.msra.mxu0 %v654
    %932 = vmatprep.subr.bf16.mxu0 %v657
    %933 = vmatpush1.bf16.msra.mxu0 %v656
    %934 = vmatprep.subr.bf16.mxu0 %v659
    %935 = vmatpush1.bf16.msra.mxu0 %v658
    %936 = vmatprep.subr.bf16.mxu0 %v661
    %937 = vmatpush1.bf16.msra.mxu0 %v660
    %938 = vmatprep.subr.bf16.mxu0 %v663
    %939 = vmatpush1.bf16.msra.mxu0 %v662
    %940 = vmatprep.mubr.bf16.mxu0 %v206
    %941 = vmatmul.mubr.bf16.gmra.mrb[0].mxu0 %v204
    %v942 = vpop.f32.mrb[0].mxu0
    %v943 = vadd.f32 %v902, %v942
    %v944 = vpop.f32.mrb[0].mxu0
    %v945 = vadd.f32 %v904, %v944
    %v946 = vpop.f32.mrb[0].mxu0
    %v947 = vpop.f32.mrb[0].mxu0
    %948 = vdwg.mxu0
    %949 = vmatprep.subr.bf16.mxu0 %v665
    %950 = vmatpush1.bf16.msra.mxu0 %v664
    %951 = vmatprep.subr.bf16.mxu0 %v667
    %952 = vmatpush1.bf16.msra.mxu0 %v666
    %953 = vmatprep.subr.bf16.mxu0 %v669
    %954 = vmatpush1.bf16.msra.mxu0 %v668
    %955 = vmatprep.subr.bf16.mxu0 %v671
    %956 = vmatpush1.bf16.msra.mxu0 %v670
    %957 = vmatprep.subr.bf16.mxu0 %v673
    %958 = vmatpush1.bf16.msra.mxu0 %v672
    %959 = vmatprep.subr.bf16.mxu0 %v675
    %960 = vmatpush1.bf16.msra.mxu0 %v674
    %961 = vmatprep.subr.bf16.mxu0 %v677
    %962 = vmatpush1.bf16.msra.mxu0 %v676
    %963 = vmatprep.subr.bf16.mxu0 %v679
    %964 = vmatpush1.bf16.msra.mxu0 %v678
    %965 = vmatprep.subr.bf16.mxu0 %v681
    %966 = vmatpush1.bf16.msra.mxu0 %v680
    %967 = vmatprep.subr.bf16.mxu0 %v683
    %968 = vmatpush1.bf16.msra.mxu0 %v682
    %969 = vmatprep.subr.bf16.mxu0 %v685
    %970 = vmatpush1.bf16.msra.mxu0 %v684
    %971 = vmatprep.subr.bf16.mxu0 %v687
    %972 = vmatpush1.bf16.msra.mxu0 %v686
    %973 = vmatprep.subr.bf16.mxu0 %v689
    %974 = vmatpush1.bf16.msra.mxu0 %v688
    %975 = vmatprep.subr.bf16.mxu0 %v691
    %976 = vmatpush1.bf16.msra.mxu0 %v690
    %977 = vmatprep.subr.bf16.mxu0 %v693
    %978 = vmatpush1.bf16.msra.mxu0 %v692
    %979 = vmatprep.subr.bf16.mxu0 %v695
    %980 = vmatpush1.bf16.msra.mxu0 %v694
    %981 = vmatprep.mubr.bf16.mxu0 %v203
    %982 = vmatmul.mubr.bf16.gmra.mrb[0].mxu0 %v189
    %v983 = vpop.f32.mrb[0].mxu0
    %v984 = vadd.f32 %v943, %v983
    %v985 = vpop.f32.mrb[0].mxu0
    %v986 = vadd.f32 %v945, %v985
    %v987 = vpop.f32.mrb[0].mxu0
    %v988 = vpop.f32.mrb[0].mxu0
    %989 = vdwg.mxu0
    %990 = vmatprep.subr.bf16.mxu0 %v697
    %991 = vmatpush1.bf16.msra.mxu0 %v696
    %992 = vmatprep.subr.bf16.mxu0 %v699
    %993 = vmatpush1.bf16.msra.mxu0 %v698
    %994 = vmatprep.subr.bf16.mxu0 %v701
    %995 = vmatpush1.bf16.msra.mxu0 %v700
    %996 = vmatprep.subr.bf16.mxu0 %v703
    %997 = vmatpush1.bf16.msra.mxu0 %v702
    %998 = vmatprep.subr.bf16.mxu0 %v705
    %999 = vmatpush1.bf16.msra.mxu0 %v704
    %1000 = vmatprep.subr.bf16.mxu0 %v707
    %1001 = vmatpush1.bf16.msra.mxu0 %v706
    %1002 = vmatprep.subr.bf16.mxu0 %v709
    %1003 = vmatpush1.bf16.msra.mxu0 %v708
    %1004 = vmatprep.subr.bf16.mxu0 %v711
    %1005 = vmatpush1.bf16.msra.mxu0 %v710
    %1006 = vmatprep.subr.bf16.mxu0 %v713
    %1007 = vmatpush1.bf16.msra.mxu0 %v712
    %1008 = vmatprep.subr.bf16.mxu0 %v715
    %1009 = vmatpush1.bf16.msra.mxu0 %v714
    %1010 = vmatprep.subr.bf16.mxu0 %v717
    %1011 = vmatpush1.bf16.msra.mxu0 %v716
    %1012 = vmatprep.subr.bf16.mxu0 %v719
    %1013 = vmatpush1.bf16.msra.mxu0 %v718
    %1014 = vmatprep.subr.bf16.mxu0 %v721
    %1015 = vmatpush1.bf16.msra.mxu0 %v720
    %1016 = vmatprep.subr.bf16.mxu0 %v723
    %1017 = vmatpush1.bf16.msra.mxu0 %v722
    %1018 = vmatprep.subr.bf16.mxu0 %v725
    %1019 = vmatpush1.bf16.msra.mxu0 %v724
    %1020 = vmatprep.subr.bf16.mxu0 %v727
    %1021 = vmatpush1.bf16.msra.mxu0 %v726
    %1022 = vmatprep.mubr.bf16.mxu0 %v207
    %1023 = vmatmul.mubr.bf16.gmra.mrb[0].mxu0 %v205
    %v1024 = vpop.f32.mrb[0].mxu0
    %v1025 = vadd.f32 %v984, %v1024
    %v1026 = vpop.f32.mrb[0].mxu0
    %v1027 = vadd.f32 %v986, %v1026
    %v1028 = vpop.f32.mrb[0].mxu0
    %v1029 = vpop.f32.mrb[0].mxu0
    %1030 = vdwg.mxu0
    %v1031 = vmax.f32 %v1025, 0.0
    %v1032 = vmax.f32 %v1027, 0.0
    %v1033 = vld [vmem:[%s0 + $0x8] sm:$0x3]
    %v1034 = vld [vmem:[#allocation2 + $0x400] sm:$0xff]
    %v1035 = vld [vmem:[#allocation2 + $0x408] sm:$0xff]
    %v1036 = vld [vmem:[#allocation2 + $0x410] sm:$0xff]
    %v1037 = vld [vmem:[#allocation2 + $0x418] sm:$0xff]
    %v1038 = vld [vmem:[#allocation2 + $0x420] sm:$0xff]
    %v1039 = vld [vmem:[#allocation2 + $0x428] sm:$0xff]
    %v1040 = vld [vmem:[#allocation2 + $0x430] sm:$0xff]
    %v1041 = vld [vmem:[#allocation2 + $0x438] sm:$0xff]
    %v1042 = vld [vmem:[#allocation2 + $0x440] sm:$0xff]
    %v1043 = vld [vmem:[#allocation2 + $0x448] sm:$0xff]
    %v1044 = vld [vmem:[#allocation2 + $0x450] sm:$0xff]
    %v1045 = vld [vmem:[#allocation2 + $0x458] sm:$0xff]
    %v1046 = vld [vmem:[#allocation2 + $0x460] sm:$0xff]
    %v1047 = vld [vmem:[#allocation2 + $0x468] sm:$0xff]
    %v1048 = vld [vmem:[#allocation2 + $0x470] sm:$0xff]
    %v1049 = vld [vmem:[#allocation2 + $0x478] sm:$0xff]
    %v1050 = vld [vmem:[#allocation2 + $0x480] sm:$0xff]
    %v1051 = vld [vmem:[#allocation2 + $0x488] sm:$0xff]
    %v1052 = vld [vmem:[#allocation2 + $0x490] sm:$0xff]
    %v1053 = vld [vmem:[#allocation2 + $0x498] sm:$0xff]
    %v1054 = vld [vmem:[#allocation2 + $0x4a0] sm:$0xff]
    %v1055 = vld [vmem:[#allocation2 + $0x4a8] sm:$0xff]
    %v1056 = vld [vmem:[#allocation2 + $0x4b0] sm:$0xff]
    %v1057 = vld [vmem:[#allocation2 + $0x4b8] sm:$0xff]
    %v1058 = vld [vmem:[#allocation2 + $0x4c0] sm:$0xff]
    %v1059 = vld [vmem:[#allocation2 + $0x4c8] sm:$0xff]
    %v1060 = vld [vmem:[#allocation2 + $0x4d0] sm:$0xff]
    %v1061 = vld [vmem:[#allocation2 + $0x4d8] sm:$0xff]
    %v1062 = vld [vmem:[#allocation2 + $0x4e0] sm:$0xff]
    %v1063 = vld [vmem:[#allocation2 + $0x4e8] sm:$0xff]
    %v1064 = vld [vmem:[#allocation2 + $0x4f0] sm:$0xff]
    %v1065 = vld [vmem:[#allocation2 + $0x4f8] sm:$0xff]
    %s1066 = scalar_lea.vmem %s2, 1
    %v1067 = vld [vmem:[%s1066] ss:$4 sm:$0x3]
    %v1070 = vunpack.c.l.s4 1966171168
    %v1071 = vunpack.c.0.s8 %v1070
    %v1072 = vlaneseq
    %v1073 = vshrl.u32 %v1072, 7
    %v1074 = vsub.s32 %v1071, %v1073
    %v1075 = vrot.slane %v1033, %v1074
    %v1076 = vcombine.high %v1075, %v1075
    %v1078 = vunpack.c.l.s4 1966171168
    %v1079 = vunpack.c.0.s8 %v1078
    %v1080 = vlaneseq
    %v1081 = vshrl.u32 %v1080, 7
    %v1082 = vsub.s32 %v1079, %v1081
    %v1083 = vrot.slane %v1075, %v1082
    %v1085 = vunpack.c.l.s4 1966171168
    %v1086 = vunpack.c.0.s8 %v1085
    %v1087 = vlaneseq
    %v1088 = vshrl.u32 %v1087, 7
    %v1089 = vsub.s32 %v1086, %v1088
    %v1090 = vrot.slane %v1076, %v1089
    %v1125 = vunpack.c.l.b16 %v1034
    %v1126 = vunpack.c.h.b16 %v1034
    %v1127 = vunpack.c.l.b16 %v1035
    %v1128 = vunpack.c.h.b16 %v1035
    %v1129 = vunpack.c.l.b16 %v1036
    %v1130 = vunpack.c.h.b16 %v1036
    %v1131 = vunpack.c.l.b16 %v1037
    %v1132 = vunpack.c.h.b16 %v1037
    %v1133 = vunpack.c.l.b16 %v1038
    %v1134 = vunpack.c.h.b16 %v1038
    %v1135 = vunpack.c.l.b16 %v1039
    %v1136 = vunpack.c.h.b16 %v1039
    %v1137 = vunpack.c.l.b16 %v1040
    %v1138 = vunpack.c.h.b16 %v1040
    %v1139 = vunpack.c.l.b16 %v1041
    %v1140 = vunpack.c.h.b16 %v1041
    %v1141 = vunpack.c.l.b16 %v1042
    %v1142 = vunpack.c.h.b16 %v1042
    %v1143 = vunpack.c.l.b16 %v1043
    %v1144 = vunpack.c.h.b16 %v1043
    %v1145 = vunpack.c.l.b16 %v1044
    %v1146 = vunpack.c.h.b16 %v1044
    %v1147 = vunpack.c.l.b16 %v1045
    %v1148 = vunpack.c.h.b16 %v1045
    %v1149 = vunpack.c.l.b16 %v1046
    %v1150 = vunpack.c.h.b16 %v1046
    %v1151 = vunpack.c.l.b16 %v1047
    %v1152 = vunpack.c.h.b16 %v1047
    %v1153 = vunpack.c.l.b16 %v1048
    %v1154 = vunpack.c.h.b16 %v1048
    %v1155 = vunpack.c.l.b16 %v1049
    %v1156 = vunpack.c.h.b16 %v1049
    %v1157 = vunpack.c.l.b16 %v1050
    %v1158 = vunpack.c.h.b16 %v1050
    %v1159 = vunpack.c.l.b16 %v1051
    %v1160 = vunpack.c.h.b16 %v1051
    %v1161 = vunpack.c.l.b16 %v1052
    %v1162 = vunpack.c.h.b16 %v1052
    %v1163 = vunpack.c.l.b16 %v1053
    %v1164 = vunpack.c.h.b16 %v1053
    %v1165 = vunpack.c.l.b16 %v1054
    %v1166 = vunpack.c.h.b16 %v1054
    %v1167 = vunpack.c.l.b16 %v1055
    %v1168 = vunpack.c.h.b16 %v1055
    %v1169 = vunpack.c.l.b16 %v1056
    %v1170 = vunpack.c.h.b16 %v1056
    %v1171 = vunpack.c.l.b16 %v1057
    %v1172 = vunpack.c.h.b16 %v1057
    %v1173 = vunpack.c.l.b16 %v1058
    %v1174 = vunpack.c.h.b16 %v1058
    %v1175 = vunpack.c.l.b16 %v1059
    %v1176 = vunpack.c.h.b16 %v1059
    %v1177 = vunpack.c.l.b16 %v1060
    %v1178 = vunpack.c.h.b16 %v1060
    %v1179 = vunpack.c.l.b16 %v1061
    %v1180 = vunpack.c.h.b16 %v1061
    %v1181 = vunpack.c.l.b16 %v1062
    %v1182 = vunpack.c.h.b16 %v1062
    %v1183 = vunpack.c.l.b16 %v1063
    %v1184 = vunpack.c.h.b16 %v1063
    %v1185 = vunpack.c.l.b16 %v1064
    %v1186 = vunpack.c.h.b16 %v1064
    %v1187 = vunpack.c.l.b16 %v1065
    %v1188 = vunpack.c.h.b16 %v1065
    %v1189 = vpack.c.b16 %v1127, %v1125
    %v1190 = vpack.c.b16 %v1128, %v1126
    %v1191 = vpack.c.b16 %v1131, %v1129
    %v1192 = vpack.c.b16 %v1132, %v1130
    %v1193 = vpack.c.b16 %v1135, %v1133
    %v1194 = vpack.c.b16 %v1136, %v1134
    %v1195 = vpack.c.b16 %v1139, %v1137
    %v1196 = vpack.c.b16 %v1140, %v1138
    %v1197 = vpack.c.b16 %v1143, %v1141
    %v1198 = vpack.c.b16 %v1144, %v1142
    %v1199 = vpack.c.b16 %v1147, %v1145
    %v1200 = vpack.c.b16 %v1148, %v1146
    %v1201 = vpack.c.b16 %v1151, %v1149
    %v1202 = vpack.c.b16 %v1152, %v1150
    %v1203 = vpack.c.b16 %v1155, %v1153
    %v1204 = vpack.c.b16 %v1156, %v1154
    %v1205 = vpack.c.b16 %v1159, %v1157
    %v1206 = vpack.c.b16 %v1160, %v1158
    %v1207 = vpack.c.b16 %v1163, %v1161
    %v1208 = vpack.c.b16 %v1164, %v1162
    %v1209 = vpack.c.b16 %v1167, %v1165
    %v1210 = vpack.c.b16 %v1168, %v1166
    %v1211 = vpack.c.b16 %v1171, %v1169
    %v1212 = vpack.c.b16 %v1172, %v1170
    %v1213 = vpack.c.b16 %v1175, %v1173
    %v1214 = vpack.c.b16 %v1176, %v1174
    %v1215 = vpack.c.b16 %v1179, %v1177
    %v1216 = vpack.c.b16 %v1180, %v1178
    %v1217 = vpack.c.b16 %v1183, %v1181
    %v1218 = vpack.c.b16 %v1184, %v1182
    %v1219 = vpack.c.b16 %v1187, %v1185
    %v1220 = vpack.c.b16 %v1188, %v1186
    %v1254 = vlaneseq
    %v1255 = vshrl.u32 %v1254, 7
    %v1256 = vsub.s32 0, %v1255
    %v1257 = vrot.slane %v1067, %v1256
    %v1258 = vlaneseq
    %v1259 = vshrl.u32 %v1258, 7
    %v1260 = vsub.s32 1, %v1259
    %v1261 = vrot.slane %v1067, %v1260
    %1264 = vmatprep.subr.bf16.mxu0 %v1190
    %1265 = vmatpush1.bf16.msra.mxu0 %v1189
    %1266 = vmatprep.subr.bf16.mxu0 %v1192
    %1267 = vmatpush1.bf16.msra.mxu0 %v1191
    %1268 = vmatprep.subr.bf16.mxu0 %v1194
    %1269 = vmatpush1.bf16.msra.mxu0 %v1193
    %1270 = vmatprep.subr.bf16.mxu0 %v1196
    %1271 = vmatpush1.bf16.msra.mxu0 %v1195
    %1272 = vmatprep.subr.bf16.mxu0 %v1198
    %1273 = vmatpush1.bf16.msra.mxu0 %v1197
    %1274 = vmatprep.subr.bf16.mxu0 %v1200
    %1275 = vmatpush1.bf16.msra.mxu0 %v1199
    %1276 = vmatprep.subr.bf16.mxu0 %v1202
    %1277 = vmatpush1.bf16.msra.mxu0 %v1201
    %1278 = vmatprep.subr.bf16.mxu0 %v1204
    %1279 = vmatpush1.bf16.msra.mxu0 %v1203
    %1280 = vmatprep.subr.bf16.mxu0 %v1206
    %1281 = vmatpush1.bf16.msra.mxu0 %v1205
    %1282 = vmatprep.subr.bf16.mxu0 %v1208
    %1283 = vmatpush1.bf16.msra.mxu0 %v1207
    %1284 = vmatprep.subr.bf16.mxu0 %v1210
    %1285 = vmatpush1.bf16.msra.mxu0 %v1209
    %1286 = vmatprep.subr.bf16.mxu0 %v1212
    %1287 = vmatpush1.bf16.msra.mxu0 %v1211
    %1288 = vmatprep.subr.bf16.mxu0 %v1214
    %1289 = vmatpush1.bf16.msra.mxu0 %v1213
    %1290 = vmatprep.subr.bf16.mxu0 %v1216
    %1291 = vmatpush1.bf16.msra.mxu0 %v1215
    %1292 = vmatprep.subr.bf16.mxu0 %v1218
    %1293 = vmatpush1.bf16.msra.mxu0 %v1217
    %1294 = vmatprep.subr.bf16.mxu0 %v1220
    %1295 = vmatpush1.bf16.msra.mxu0 %v1219
    %1296 = vmatprep.mubr.bf16.mxu0 %v1090
    %1297 = vmatmul.mubr.bf16.gmra.mrb[0].mxu0 %v1083
    %v1298 = vpop.f32.mrb[0].mxu0
    %v1299 = vadd.f32 %v1257, %v1298
    %v1300 = vpop.f32.mrb[0].mxu0
    %v1301 = vadd.f32 %v1261, %v1300
    %v1302 = vpop.f32.mrb[0].mxu0
    %v1303 = vpop.f32.mrb[0].mxu0
    %1304 = vdwg.mxu0
    %v1305 = vmax.f32 %v1299, 0.0
    %v1306 = vmax.f32 %v1301, 0.0
    %v1307 = vpack.c.bf16 %v1031, %v1031
    %v1308 = vpack.c.bf16 %v1032, %v1032
    %v1309 = vld [vmem:[#allocation2 + $0x500] sm:$0xff]
    %v1310 = vld [vmem:[#allocation2 + $0x508] sm:$0xff]
    %v1311 = vld [vmem:[#allocation2 + $0x510] sm:$0xff]
    %v1312 = vld [vmem:[#allocation2 + $0x518] sm:$0xff]
    %v1313 = vld [vmem:[#allocation2 + $0x520] sm:$0xff]
    %v1314 = vld [vmem:[#allocation2 + $0x528] sm:$0xff]
    %v1315 = vld [vmem:[#allocation2 + $0x530] sm:$0xff]
    %v1316 = vld [vmem:[#allocation2 + $0x538] sm:$0xff]
    %v1317 = vld [vmem:[#allocation2 + $0x540] sm:$0xff]
    %v1318 = vld [vmem:[#allocation2 + $0x548] sm:$0xff]
    %v1319 = vld [vmem:[#allocation2 + $0x550] sm:$0xff]
    %v1320 = vld [vmem:[#allocation2 + $0x558] sm:$0xff]
    %v1321 = vld [vmem:[#allocation2 + $0x560] sm:$0xff]
    %v1322 = vld [vmem:[#allocation2 + $0x568] sm:$0xff]
    %v1323 = vld [vmem:[#allocation2 + $0x570] sm:$0xff]
    %v1324 = vld [vmem:[#allocation2 + $0x578] sm:$0xff]
    %v1325 = vld [vmem:[#allocation2 + $0x580] sm:$0xff]
    %v1326 = vld [vmem:[#allocation2 + $0x588] sm:$0xff]
    %v1327 = vld [vmem:[#allocation2 + $0x590] sm:$0xff]
    %v1328 = vld [vmem:[#allocation2 + $0x598] sm:$0xff]
    %v1329 = vld [vmem:[#allocation2 + $0x5a0] sm:$0xff]
    %v1330 = vld [vmem:[#allocation2 + $0x5a8] sm:$0xff]
    %v1331 = vld [vmem:[#allocation2 + $0x5b0] sm:$0xff]
    %v1332 = vld [vmem:[#allocation2 + $0x5b8] sm:$0xff]
    %v1333 = vld [vmem:[#allocation2 + $0x5c0] sm:$0xff]
    %v1334 = vld [vmem:[#allocation2 + $0x5c8] sm:$0xff]
    %v1335 = vld [vmem:[#allocation2 + $0x5d0] sm:$0xff]
    %v1336 = vld [vmem:[#allocation2 + $0x5d8] sm:$0xff]
    %v1337 = vld [vmem:[#allocation2 + $0x5e0] sm:$0xff]
    %v1338 = vld [vmem:[#allocation2 + $0x5e8] sm:$0xff]
    %v1339 = vld [vmem:[#allocation2 + $0x5f0] sm:$0xff]
    %v1340 = vld [vmem:[#allocation2 + $0x5f8] sm:$0xff]
    %v1341 = vpack.c.bf16 %v1305, %v1305
    %v1342 = vpack.c.bf16 %v1306, %v1306
    %v1343 = vld [vmem:[#allocation2 + $0x600] sm:$0xff]
    %v1344 = vld [vmem:[#allocation2 + $0x608] sm:$0xff]
    %v1345 = vld [vmem:[#allocation2 + $0x610] sm:$0xff]
    %v1346 = vld [vmem:[#allocation2 + $0x618] sm:$0xff]
    %v1347 = vld [vmem:[#allocation2 + $0x620] sm:$0xff]
    %v1348 = vld [vmem:[#allocation2 + $0x628] sm:$0xff]
    %v1349 = vld [vmem:[#allocation2 + $0x630] sm:$0xff]
    %v1350 = vld [vmem:[#allocation2 + $0x638] sm:$0xff]
    %v1351 = vld [vmem:[#allocation2 + $0x640] sm:$0xff]
    %v1352 = vld [vmem:[#allocation2 + $0x648] sm:$0xff]
    %v1353 = vld [vmem:[#allocation2 + $0x650] sm:$0xff]
    %v1354 = vld [vmem:[#allocation2 + $0x658] sm:$0xff]
    %v1355 = vld [vmem:[#allocation2 + $0x660] sm:$0xff]
    %v1356 = vld [vmem:[#allocation2 + $0x668] sm:$0xff]
    %v1357 = vld [vmem:[#allocation2 + $0x670] sm:$0xff]
    %v1358 = vld [vmem:[#allocation2 + $0x678] sm:$0xff]
    %v1359 = vld [vmem:[#allocation2 + $0x680] sm:$0xff]
    %v1360 = vld [vmem:[#allocation2 + $0x688] sm:$0xff]
    %v1361 = vld [vmem:[#allocation2 + $0x690] sm:$0xff]
    %v1362 = vld [vmem:[#allocation2 + $0x698] sm:$0xff]
    %v1363 = vld [vmem:[#allocation2 + $0x6a0] sm:$0xff]
    %v1364 = vld [vmem:[#allocation2 + $0x6a8] sm:$0xff]
    %v1365 = vld [vmem:[#allocation2 + $0x6b0] sm:$0xff]
    %v1366 = vld [vmem:[#allocation2 + $0x6b8] sm:$0xff]
    %v1367 = vld [vmem:[#allocation2 + $0x6c0] sm:$0xff]
    %v1368 = vld [vmem:[#allocation2 + $0x6c8] sm:$0xff]
    %v1369 = vld [vmem:[#allocation2 + $0x6d0] sm:$0xff]
    %v1370 = vld [vmem:[#allocation2 + $0x6d8] sm:$0xff]
    %v1371 = vld [vmem:[#allocation2 + $0x6e0] sm:$0xff]
    %v1372 = vld [vmem:[#allocation2 + $0x6e8] sm:$0xff]
    %v1373 = vld [vmem:[#allocation2 + $0x6f0] sm:$0xff]
    %v1374 = vld [vmem:[#allocation2 + $0x6f8] sm:$0xff]
    %v1407 = vunpack.c.l.b16 %v1343
    %v1408 = vunpack.c.h.b16 %v1343
    %v1409 = vunpack.c.l.b16 %v1344
    %v1410 = vunpack.c.h.b16 %v1344
    %v1411 = vunpack.c.l.b16 %v1345
    %v1412 = vunpack.c.h.b16 %v1345
    %v1413 = vunpack.c.l.b16 %v1346
    %v1414 = vunpack.c.h.b16 %v1346
    %v1415 = vunpack.c.l.b16 %v1347
    %v1416 = vunpack.c.h.b16 %v1347
    %v1417 = vunpack.c.l.b16 %v1348
    %v1418 = vunpack.c.h.b16 %v1348
    %v1419 = vunpack.c.l.b16 %v1349
    %v1420 = vunpack.c.h.b16 %v1349
    %v1421 = vunpack.c.l.b16 %v1350
    %v1422 = vunpack.c.h.b16 %v1350
    %v1423 = vunpack.c.l.b16 %v1351
    %v1424 = vunpack.c.h.b16 %v1351
    %v1425 = vunpack.c.l.b16 %v1352
    %v1426 = vunpack.c.h.b16 %v1352
    %v1427 = vunpack.c.l.b16 %v1353
    %v1428 = vunpack.c.h.b16 %v1353
    %v1429 = vunpack.c.l.b16 %v1354
    %v1430 = vunpack.c.h.b16 %v1354
    %v1431 = vunpack.c.l.b16 %v1355
    %v1432 = vunpack.c.h.b16 %v1355
    %v1433 = vunpack.c.l.b16 %v1356
    %v1434 = vunpack.c.h.b16 %v1356
    %v1435 = vunpack.c.l.b16 %v1357
    %v1436 = vunpack.c.h.b16 %v1357
    %v1437 = vunpack.c.l.b16 %v1358
    %v1438 = vunpack.c.h.b16 %v1358
    %v1439 = vunpack.c.l.b16 %v1359
    %v1440 = vunpack.c.h.b16 %v1359
    %v1441 = vunpack.c.l.b16 %v1360
    %v1442 = vunpack.c.h.b16 %v1360
    %v1443 = vunpack.c.l.b16 %v1361
    %v1444 = vunpack.c.h.b16 %v1361
    %v1445 = vunpack.c.l.b16 %v1362
    %v1446 = vunpack.c.h.b16 %v1362
    %v1447 = vunpack.c.l.b16 %v1363
    %v1448 = vunpack.c.h.b16 %v1363
    %v1449 = vunpack.c.l.b16 %v1364
    %v1450 = vunpack.c.h.b16 %v1364
    %v1451 = vunpack.c.l.b16 %v1365
    %v1452 = vunpack.c.h.b16 %v1365
    %v1453 = vunpack.c.l.b16 %v1366
    %v1454 = vunpack.c.h.b16 %v1366
    %v1455 = vunpack.c.l.b16 %v1367
    %v1456 = vunpack.c.h.b16 %v1367
    %v1457 = vunpack.c.l.b16 %v1368
    %v1458 = vunpack.c.h.b16 %v1368
    %v1459 = vunpack.c.l.b16 %v1369
    %v1460 = vunpack.c.h.b16 %v1369
    %v1461 = vunpack.c.l.b16 %v1370
    %v1462 = vunpack.c.h.b16 %v1370
    %v1463 = vunpack.c.l.b16 %v1371
    %v1464 = vunpack.c.h.b16 %v1371
    %v1465 = vunpack.c.l.b16 %v1372
    %v1466 = vunpack.c.h.b16 %v1372
    %v1467 = vunpack.c.l.b16 %v1373
    %v1468 = vunpack.c.h.b16 %v1373
    %v1469 = vunpack.c.l.b16 %v1374
    %v1470 = vunpack.c.h.b16 %v1374
    %v1471 = vpack.c.b16 %v1409, %v1407
    %v1472 = vpack.c.b16 %v1410, %v1408
    %v1473 = vpack.c.b16 %v1413, %v1411
    %v1474 = vpack.c.b16 %v1414, %v1412
    %v1475 = vpack.c.b16 %v1417, %v1415
    %v1476 = vpack.c.b16 %v1418, %v1416
    %v1477 = vpack.c.b16 %v1421, %v1419
    %v1478 = vpack.c.b16 %v1422, %v1420
    %v1479 = vpack.c.b16 %v1425, %v1423
    %v1480 = vpack.c.b16 %v1426, %v1424
    %v1481 = vpack.c.b16 %v1429, %v1427
    %v1482 = vpack.c.b16 %v1430, %v1428
    %v1483 = vpack.c.b16 %v1433, %v1431
    %v1484 = vpack.c.b16 %v1434, %v1432
    %v1485 = vpack.c.b16 %v1437, %v1435
    %v1486 = vpack.c.b16 %v1438, %v1436
    %v1487 = vpack.c.b16 %v1441, %v1439
    %v1488 = vpack.c.b16 %v1442, %v1440
    %v1489 = vpack.c.b16 %v1445, %v1443
    %v1490 = vpack.c.b16 %v1446, %v1444
    %v1491 = vpack.c.b16 %v1449, %v1447
    %v1492 = vpack.c.b16 %v1450, %v1448
    %v1493 = vpack.c.b16 %v1453, %v1451
    %v1494 = vpack.c.b16 %v1454, %v1452
    %v1495 = vpack.c.b16 %v1457, %v1455
    %v1496 = vpack.c.b16 %v1458, %v1456
    %v1497 = vpack.c.b16 %v1461, %v1459
    %v1498 = vpack.c.b16 %v1462, %v1460
    %v1499 = vpack.c.b16 %v1465, %v1463
    %v1500 = vpack.c.b16 %v1466, %v1464
    %v1501 = vpack.c.b16 %v1469, %v1467
    %v1502 = vpack.c.b16 %v1470, %v1468
    %1535 = vmatprep.subr.bf16.mxu0 %v1472
    %1536 = vmatpush1.bf16.msra.mxu0 %v1471
    %1537 = vmatprep.subr.bf16.mxu0 %v1474
    %1538 = vmatpush1.bf16.msra.mxu0 %v1473
    %1539 = vmatprep.subr.bf16.mxu0 %v1476
    %1540 = vmatpush1.bf16.msra.mxu0 %v1475
    %1541 = vmatprep.subr.bf16.mxu0 %v1478
    %1542 = vmatpush1.bf16.msra.mxu0 %v1477
    %1543 = vmatprep.subr.bf16.mxu0 %v1480
    %1544 = vmatpush1.bf16.msra.mxu0 %v1479
    %1545 = vmatprep.subr.bf16.mxu0 %v1482
    %1546 = vmatpush1.bf16.msra.mxu0 %v1481
    %1547 = vmatprep.subr.bf16.mxu0 %v1484
    %1548 = vmatpush1.bf16.msra.mxu0 %v1483
    %1549 = vmatprep.subr.bf16.mxu0 %v1486
    %1550 = vmatpush1.bf16.msra.mxu0 %v1485
    %1551 = vmatprep.subr.bf16.mxu0 %v1488
    %1552 = vmatpush1.bf16.msra.mxu0 %v1487
    %1553 = vmatprep.subr.bf16.mxu0 %v1490
    %1554 = vmatpush1.bf16.msra.mxu0 %v1489
    %1555 = vmatprep.subr.bf16.mxu0 %v1492
    %1556 = vmatpush1.bf16.msra.mxu0 %v1491
    %1557 = vmatprep.subr.bf16.mxu0 %v1494
    %1558 = vmatpush1.bf16.msra.mxu0 %v1493
    %1559 = vmatprep.subr.bf16.mxu0 %v1496
    %1560 = vmatpush1.bf16.msra.mxu0 %v1495
    %1561 = vmatprep.subr.bf16.mxu0 %v1498
    %1562 = vmatpush1.bf16.msra.mxu0 %v1497
    %1563 = vmatprep.subr.bf16.mxu0 %v1500
    %1564 = vmatpush1.bf16.msra.mxu0 %v1499
    %1565 = vmatprep.subr.bf16.mxu0 %v1502
    %1566 = vmatpush1.bf16.msra.mxu0 %v1501
    %1567 = vmatprep.mubr.bf16.mxu0 %v1342
    %1568 = vmatmul.mubr.bf16.gmra.mrb[0].mxu0 %v1341
    %v1569 = vpop.f32.mrb[0].mxu0
    %v1570 = vadd.f32 0.0, %v1569
    %v1571 = vpop.f32.mrb[0].mxu0
    %v1572 = vadd.f32 0.0, %v1571
    %v1573 = vpop.f32.mrb[0].mxu0
    %v1574 = vpop.f32.mrb[0].mxu0
    %1575 = vdwg.mxu0
    %v1608 = vunpack.c.l.b16 %v1309
    %v1609 = vunpack.c.h.b16 %v1309
    %v1610 = vunpack.c.l.b16 %v1310
    %v1611 = vunpack.c.h.b16 %v1310
    %v1612 = vunpack.c.l.b16 %v1311
    %v1613 = vunpack.c.h.b16 %v1311
    %v1614 = vunpack.c.l.b16 %v1312
    %v1615 = vunpack.c.h.b16 %v1312
    %v1616 = vunpack.c.l.b16 %v1313
    %v1617 = vunpack.c.h.b16 %v1313
    %v1618 = vunpack.c.l.b16 %v1314
    %v1619 = vunpack.c.h.b16 %v1314
    %v1620 = vunpack.c.l.b16 %v1315
    %v1621 = vunpack.c.h.b16 %v1315
    %v1622 = vunpack.c.l.b16 %v1316
    %v1623 = vunpack.c.h.b16 %v1316
    %v1624 = vunpack.c.l.b16 %v1317
    %v1625 = vunpack.c.h.b16 %v1317
    %v1626 = vunpack.c.l.b16 %v1318
    %v1627 = vunpack.c.h.b16 %v1318
    %v1628 = vunpack.c.l.b16 %v1319
    %v1629 = vunpack.c.h.b16 %v1319
    %v1630 = vunpack.c.l.b16 %v1320
    %v1631 = vunpack.c.h.b16 %v1320
    %v1632 = vunpack.c.l.b16 %v1321
    %v1633 = vunpack.c.h.b16 %v1321
    %v1634 = vunpack.c.l.b16 %v1322
    %v1635 = vunpack.c.h.b16 %v1322
    %v1636 = vunpack.c.l.b16 %v1323
    %v1637 = vunpack.c.h.b16 %v1323
    %v1638 = vunpack.c.l.b16 %v1324
    %v1639 = vunpack.c.h.b16 %v1324
    %v1640 = vunpack.c.l.b16 %v1325
    %v1641 = vunpack.c.h.b16 %v1325
    %v1642 = vunpack.c.l.b16 %v1326
    %v1643 = vunpack.c.h.b16 %v1326
    %v1644 = vunpack.c.l.b16 %v1327
    %v1645 = vunpack.c.h.b16 %v1327
    %v1646 = vunpack.c.l.b16 %v1328
    %v1647 = vunpack.c.h.b16 %v1328
    %v1648 = vunpack.c.l.b16 %v1329
    %v1649 = vunpack.c.h.b16 %v1329
    %v1650 = vunpack.c.l.b16 %v1330
    %v1651 = vunpack.c.h.b16 %v1330
    %v1652 = vunpack.c.l.b16 %v1331
    %v1653 = vunpack.c.h.b16 %v1331
    %v1654 = vunpack.c.l.b16 %v1332
    %v1655 = vunpack.c.h.b16 %v1332
    %v1656 = vunpack.c.l.b16 %v1333
    %v1657 = vunpack.c.h.b16 %v1333
    %v1658 = vunpack.c.l.b16 %v1334
    %v1659 = vunpack.c.h.b16 %v1334
    %v1660 = vunpack.c.l.b16 %v1335
    %v1661 = vunpack.c.h.b16 %v1335
    %v1662 = vunpack.c.l.b16 %v1336
    %v1663 = vunpack.c.h.b16 %v1336
    %v1664 = vunpack.c.l.b16 %v1337
    %v1665 = vunpack.c.h.b16 %v1337
    %v1666 = vunpack.c.l.b16 %v1338
    %v1667 = vunpack.c.h.b16 %v1338
    %v1668 = vunpack.c.l.b16 %v1339
    %v1669 = vunpack.c.h.b16 %v1339
    %v1670 = vunpack.c.l.b16 %v1340
    %v1671 = vunpack.c.h.b16 %v1340
    %v1672 = vpack.c.b16 %v1610, %v1608
    %v1673 = vpack.c.b16 %v1611, %v1609
    %v1674 = vpack.c.b16 %v1614, %v1612
    %v1675 = vpack.c.b16 %v1615, %v1613
    %v1676 = vpack.c.b16 %v1618, %v1616
    %v1677 = vpack.c.b16 %v1619, %v1617
    %v1678 = vpack.c.b16 %v1622, %v1620
    %v1679 = vpack.c.b16 %v1623, %v1621
    %v1680 = vpack.c.b16 %v1626, %v1624
    %v1681 = vpack.c.b16 %v1627, %v1625
    %v1682 = vpack.c.b16 %v1630, %v1628
    %v1683 = vpack.c.b16 %v1631, %v1629
    %v1684 = vpack.c.b16 %v1634, %v1632
    %v1685 = vpack.c.b16 %v1635, %v1633
    %v1686 = vpack.c.b16 %v1638, %v1636
    %v1687 = vpack.c.b16 %v1639, %v1637
    %v1688 = vpack.c.b16 %v1642, %v1640
    %v1689 = vpack.c.b16 %v1643, %v1641
    %v1690 = vpack.c.b16 %v1646, %v1644
    %v1691 = vpack.c.b16 %v1647, %v1645
    %v1692 = vpack.c.b16 %v1650, %v1648
    %v1693 = vpack.c.b16 %v1651, %v1649
    %v1694 = vpack.c.b16 %v1654, %v1652
    %v1695 = vpack.c.b16 %v1655, %v1653
    %v1696 = vpack.c.b16 %v1658, %v1656
    %v1697 = vpack.c.b16 %v1659, %v1657
    %v1698 = vpack.c.b16 %v1662, %v1660
    %v1699 = vpack.c.b16 %v1663, %v1661
    %v1700 = vpack.c.b16 %v1666, %v1664
    %v1701 = vpack.c.b16 %v1667, %v1665
    %v1702 = vpack.c.b16 %v1670, %v1668
    %v1703 = vpack.c.b16 %v1671, %v1669
    %1736 = vmatprep.subr.bf16.mxu0 %v1673
    %1737 = vmatpush1.bf16.msra.mxu0 %v1672
    %1738 = vmatprep.subr.bf16.mxu0 %v1675
    %1739 = vmatpush1.bf16.msra.mxu0 %v1674
    %1740 = vmatprep.subr.bf16.mxu0 %v1677
    %1741 = vmatpush1.bf16.msra.mxu0 %v1676
    %1742 = vmatprep.subr.bf16.mxu0 %v1679
    %1743 = vmatpush1.bf16.msra.mxu0 %v1678
    %1744 = vmatprep.subr.bf16.mxu0 %v1681
    %1745 = vmatpush1.bf16.msra.mxu0 %v1680
    %1746 = vmatprep.subr.bf16.mxu0 %v1683
    %1747 = vmatpush1.bf16.msra.mxu0 %v1682
    %1748 = vmatprep.subr.bf16.mxu0 %v1685
    %1749 = vmatpush1.bf16.msra.mxu0 %v1684
    %1750 = vmatprep.subr.bf16.mxu0 %v1687
    %1751 = vmatpush1.bf16.msra.mxu0 %v1686
    %1752 = vmatprep.subr.bf16.mxu0 %v1689
    %1753 = vmatpush1.bf16.msra.mxu0 %v1688
    %1754 = vmatprep.subr.bf16.mxu0 %v1691
    %1755 = vmatpush1.bf16.msra.mxu0 %v1690
    %1756 = vmatprep.subr.bf16.mxu0 %v1693
    %1757 = vmatpush1.bf16.msra.mxu0 %v1692
    %1758 = vmatprep.subr.bf16.mxu0 %v1695
    %1759 = vmatpush1.bf16.msra.mxu0 %v1694
    %1760 = vmatprep.subr.bf16.mxu0 %v1697
    %1761 = vmatpush1.bf16.msra.mxu0 %v1696
    %1762 = vmatprep.subr.bf16.mxu0 %v1699
    %1763 = vmatpush1.bf16.msra.mxu0 %v1698
    %1764 = vmatprep.subr.bf16.mxu0 %v1701
    %1765 = vmatpush1.bf16.msra.mxu0 %v1700
    %1766 = vmatprep.subr.bf16.mxu0 %v1703
    %1767 = vmatpush1.bf16.msra.mxu0 %v1702
    %1768 = vmatprep.mubr.bf16.mxu0 %v1308
    %1769 = vmatmul.mubr.bf16.gmra.mrb[0].mxu0 %v1307
    %v1770 = vpop.f32.mrb[0].mxu0
    %v1771 = vadd.f32 %v1570, %v1770
    %v1772 = vpop.f32.mrb[0].mxu0
    %v1773 = vadd.f32 %v1572, %v1772
    %v1774 = vpop.f32.mrb[0].mxu0
    %v1775 = vpop.f32.mrb[0].mxu0
    %1776 = vdwg.mxu0
    %s1777 = scalar_lea.vmem %s2, 2
    %v1778 = vld [vmem:[%s1777] ss:$4 sm:$0x3]
    %v1780 = vlaneseq
    %v1781 = vshrl.u32 %v1780, 7
    %v1782 = vsub.s32 0, %v1781
    %v1783 = vrot.slane %v1778, %v1782
    %v1784 = vlaneseq
    %v1785 = vshrl.u32 %v1784, 7
    %v1786 = vsub.s32 1, %v1785
    %v1787 = vrot.slane %v1778, %v1786
    %v1790 = vadd.f32 %v1771, %v1783
    %v1791 = vadd.f32 %v1773, %v1787
    %v1794 = vcombine.low %v1790, %v1791
    %v1796 = vunpack.c.l.s4 1966171168
    %v1797 = vunpack.c.0.s8 %v1796
    %v1798 = vlaneseq
    %v1799 = vshrl.u32 %v1798, 7
    %v1800 = vsub.s32 %v1797, %v1799
    %v1801 = vrot.slane %v1794, %v1800
    %v1803 = vunpack.c.l.s4 1966171168
    %v1804 = vunpack.c.0.s8 %v1803
    %v1805 = vlaneseq
    %v1806 = vshrl.u32 %v1805, 7
    %v1807 = vsub.s32 %v1804, %v1806
    %v1808 = vrot.slane %v1801, %v1807
    %v1810 = vlaneseq
    %vm1811 = vcmp.ge.s32.totalorder %v1810, 0
    %vm1812 = vcmp.lt.s32.totalorder %v1810, 256
    %vm1813 = vmand %vm1811, %vm1812
    %1814 = vst.msk [vmem:[%s3] sm:$0x3] %vm1813, %v1808
    // Predicated region
    $region18: #{_forward.1} parent=1 // pred_check
      _
    $region19: #{_forward.1} parent=1 // pred_check_branch
      %1816 = sbr.rel (0) target = $region21
    $region20: #{_forward.1} parent=1 // pred_region
      _
    $region21: #{_forward.1} parent=1 // pred_fallthru
      _
    // Predicated region
    $region22: #{_forward.1} parent=1 // pred_check
      _
    $region23: #{_forward.1} parent=1 // pred_check_branch
      %1818 = sbr.rel (0) target = $region25
    $region24: #{_forward.1} parent=1 // pred_region
      _
    $region25: #{_forward.1} parent=1 // pred_fallthru
      _
    %1819 = vsyncpa [#allocation3], 1

</llo_original>
